<compile_context>
chip_gen: v7x
topology: tpu7x:2x2x1
jax: 0.10.0
libtpu: 0.0.40
codegen_flags: <defaults>
</compile_context>

<pallas_src>
import functools

import jax
import jax.numpy as jnp
from jax.experimental import pallas as pl
from jax.experimental.pallas import tpu as pltpu


# ---------------------------------------------------------------------------
# Tiling helpers
# ---------------------------------------------------------------------------
def _round_up(x, m):
    return (x + m - 1) // m * m


def _default_tile_rows():
    # v5e's 4x128 MXU saturates at 128 anchor rows and its smaller scoped VMEM
    # / single vector-store slot favour a smaller live set; v6e/v7x like 256.
    try:
        kind = jax.devices()[0].device_kind.lower()
    except Exception:
        return 256
    if "v5 lite" in kind or "v5e" in kind or "v5litepod" in kind:
        return 128
    return 256


def _choose_tiling(n_total, block_rows):
    # tm multiple of 16 keeps every in-kernel bf16 row slice aligned to the
    # native (16, 128) bf16 tile (row0 = i*tm is then always tile-aligned).
    if block_rows is not None:
        if block_rows % 16 != 0:
            raise ValueError("block_rows must be a multiple of 16")
        tm = block_rows
    else:
        cap = _default_tile_rows()
        tm = _round_up(n_total, 16) if n_total <= cap else cap
    n_pad = _round_up(n_total, tm)
    return tm, n_pad


# ---------------------------------------------------------------------------
# Fused SupConLoss kernel (one anchor-row tile per grid step, fully parallel)
# ---------------------------------------------------------------------------
def _supcon_kernel(c_ref, row_ids_ref, col_ids_ref, o_ref, *,
                   inv_temp, inv_num_pos, n_valid):
    """c_ref       : (n_pad, D) bf16  resident contrast features (constant block)
       row_ids_ref : (tm, 1)    int32 sample id of each anchor row (-1 for pad)
       col_ids_ref : (1, n_pad) int32 sample id of each contrast col (-2 for pad)
       o_ref       : (1, 1)     f32   this tile's summed (negative) loss term
    """
    i = pl.program_id(0)
    tm = row_ids_ref.shape[0]
    n_pad = c_ref.shape[0]
    row0 = pl.multiple_of(i * tm, tm)

    # Anchor rows sliced straight out of the resident contrast buffer (no
    # second DMA stream); fold 1/T into the (tm, D) LHS instead of the
    # (tm, N) logits (exact in bf16 for the default T = 0.5).
    a = c_ref[pl.ds(row0, tm), :] * inv_temp                     # (tm, D) bf16

    # MXU: bf16 operands, f32 accumulation.  Contract the feature dim
    # (== anchors @ contrast.T) so the N logit columns stay lane-dense and the
    # single (N, D) buffer can serve as both operands.
    sims = jax.lax.dot_general(
        a, c_ref[...],
        dimension_numbers=(((1,), (1,)), ((), ())),
        preferred_element_type=jnp.float32,
    )                                                            # (tm, n_pad) f32

    # Masks from tiny iotas: (tm,1) global row index vs (1,n_pad) column index.
    grow = row0 + jax.lax.broadcasted_iota(jnp.int32, (tm, 1), 0)      # (tm, 1)
    gcol = jax.lax.broadcasted_iota(jnp.int32, (1, n_pad), 1)          # (1, n_pad)
    not_self = grow != gcol                                            # (tm, n_pad)
    pos = jnp.logical_and(row_ids_ref[...] == col_ids_ref[...], not_self)

    denom_keep = not_self
    if n_valid != n_pad:                      # static: padded columns exist
        denom_keep = jnp.logical_and(denom_keep, gcol < n_valid)

    # Numerically stable masked log-softmax, restructured so no (tm, N)
    # log_prob / float-mask matrices are materialised:
    #   mean_pos_log_prob = sum_pos(logits)/(n_views-1) - log(sum_{j!=i} exp(logits))
    logits = sims - jnp.max(sims, axis=1, keepdims=True)
    exp_logits = jnp.where(denom_keep, jnp.exp(logits), 0.0)
    log_denom = jnp.log(jnp.sum(exp_logits, axis=1, keepdims=True))       # (tm, 1)
    pos_logit_sum = jnp.sum(jnp.where(pos, logits, 0.0), axis=1, keepdims=True)

    per_anchor = pos_logit_sum * inv_num_pos - log_denom                  # (tm, 1)
    if n_valid != n_pad:                      # static: zero padded anchor rows
        per_anchor = jnp.where(grow < n_valid, per_anchor, 0.0)

    # Independent per-tile partial sum -> grid axis can be "parallel"
    # (v7x megacore shards tiles across both TensorCores).
    o_ref[...] = -jnp.sum(per_anchor, axis=0, keepdims=True)


# ---------------------------------------------------------------------------
# Wrapper
# ---------------------------------------------------------------------------
def supcon_loss(features, temperature=0.5, block_rows=None, vmem_limit_bytes=None):
    """Pallas SupConLoss.forward (unsupervised / SimCLR mode: mask = eye(bsz)).

    features: [bsz, n_views, ...] -> scalar f32 loss, matching the PyTorch
    reference semantics (temperature scaling, self-exclusion, positive-mean,
    mean over anchor_count * bsz).
    """
    if features.ndim < 3:
        raise ValueError('`features` needs to be [bsz, n_views, ...], '
                         'at least 3 dimensions are required')
    bsz, n_views = features.shape[0], features.shape[1]
    if n_views < 2:
        # num_pos = n_views - 1 is used as a compile-time constant; n_views=1
        # is 0/0 (NaN) in the PyTorch reference anyway.
        raise ValueError('SimCLR SupConLoss requires n_views >= 2')

    f = features.reshape(bsz, n_views, -1).astype(jnp.float32)
    d = f.shape[-1]
    n_total = n_views * bsz
    # torch.cat(torch.unbind(features, dim=1), dim=0): view-major stacking.
    contrast = jnp.transpose(f, (1, 0, 2)).reshape(n_total, d)

    tm, n_pad = _choose_tiling(n_total, block_rows)
    num_tiles = n_pad // tm

    if n_pad != n_total:
        contrast = jnp.pad(contrast, ((0, n_pad - n_total), (0, 0)))
    # bf16 MXU operands (f32 accumulation inside the kernel).
    contrast = contrast.astype(jnp.bfloat16)

    # Sample id of stacked row j is j % bsz (computed host-side so the vector
    # kernel never needs an integer modulo); padded rows/cols get ids that can
    # never match each other or any valid id.
    ids = jnp.tile(jnp.arange(bsz, dtype=jnp.int32), n_views)
    pad = n_pad - n_total
    row_ids = jnp.concatenate(
        [ids, jnp.full((pad,), -1, jnp.int32)]).reshape(n_pad, 1)
    col_ids = jnp.concatenate(
        [ids, jnp.full((pad,), -2, jnp.int32)]).reshape(1, n_pad)

    if vmem_limit_bytes is None:
        d_pad = _round_up(d, 128)
        est = (2 * n_pad * d_pad * 2            # resident contrast (<=2 buffers)
               + 8 * tm * n_pad * 4             # f32 (tm, N) temporaries
               + 4 * (tm + n_pad) * 128 * 4     # id tiles (layout padded)
               + (4 << 20))                     # headroom
        vmem_limit_bytes = int(min(max(est, 32 << 20), 64 << 20))

    kernel = functools.partial(
        _supcon_kernel,
        inv_temp=float(1.0 / temperature),
        inv_num_pos=float(1.0 / (n_views - 1)),
        n_valid=n_total,
    )
    partials = pl.pallas_call(
        kernel,
        out_shape=jax.ShapeDtypeStruct((num_tiles, 1, 1), jnp.float32),
        grid_spec=pltpu.PrefetchScalarGridSpec(
            num_scalar_prefetch=0,
            grid=(num_tiles,),
            in_specs=[
                pl.BlockSpec((n_pad, d), lambda i: (0, 0)),   # resident contrast
                pl.BlockSpec((tm, 1), lambda i: (i, 0)),      # anchor sample ids
                pl.BlockSpec((1, n_pad), lambda i: (0, 0)),   # contrast sample ids
            ],
            out_specs=pl.BlockSpec((None, 1, 1), lambda i: (i, 0, 0)),
        ),
        compiler_params=pltpu.CompilerParams(
            dimension_semantics=("parallel",),
            vmem_limit_bytes=vmem_limit_bytes,
        ),
    )(contrast, row_ids, col_ids)

    return jnp.sum(partials) / n_total


# ---------------------------------------------------------------------------
# Pure-JAX reference (mirrors the PyTorch module line-by-line)
# ---------------------------------------------------------------------------
def supcon_loss_ref(features, temperature=0.5, cast_bf16=False):
    bsz, n_views = features.shape[0], features.shape[1]
    f = features.reshape(bsz, n_views, -1).astype(jnp.float32)
    contrast = jnp.concatenate([f[:, v] for v in range(n_views)], axis=0)
    if cast_bf16:  # same input rounding as the bf16 MXU kernel
        contrast = contrast.astype(jnp.bfloat16).astype(jnp.float32)
    n = bsz * n_views
    sims = jnp.matmul(contrast, contrast.T,
                      precision=jax.lax.Precision.HIGHEST) / temperature
    logits = sims - jnp.max(sims, axis=1, keepdims=True)
    idx = jnp.arange(n)
    not_self = (idx[:, None] != idx[None, :]).astype(jnp.float32)
    pos = ((idx[:, None] % bsz) == (idx[None, :] % bsz)).astype(jnp.float32) * not_self
    exp_logits = jnp.exp(logits) * not_self
    log_prob = logits - jnp.log(jnp.sum(exp_logits, axis=1, keepdims=True))
    mean_log_prob_pos = jnp.sum(pos * log_prob, axis=1) / jnp.sum(pos, axis=1)
    return -jnp.mean(mean_log_prob_pos)


if __name__ == "__main__":
    key = jax.random.PRNGKey(0)
    bsz, n_views, feat_dim = 8, 2, 128  # features: [bsz, n_views, D]
    x = jax.random.normal(key, (bsz, n_views, feat_dim), jnp.float32)
    # typical SimCLR usage feeds L2-normalized projections
    x = x / jnp.linalg.norm(x, axis=-1, keepdims=True)

    loss = jax.block_until_ready(jax.jit(supcon_loss)(x))
    ref_bf16 = supcon_loss_ref(x, cast_bf16=True)   # tight: same bf16 rounding
    ref_f32 = supcon_loss_ref(x)                    # sanity: full f32 reference
    assert bool(jnp.isfinite(loss)), loss
    assert abs(float(loss) - float(ref_bf16)) < 2e-3, (float(loss), float(ref_bf16))
    assert abs(float(loss) - float(ref_f32)) < 2e-2, (float(loss), float(ref_f32))

    # Exercise the multi-tile "parallel" grid + padding + masking path:
    # n_total = 20 -> padded to 32, grid = 2 tiles of 16 anchor rows.
    x2 = jax.random.normal(jax.random.PRNGKey(1), (10, 2, 64), jnp.float32)
    x2 = x2 / jnp.linalg.norm(x2, axis=-1, keepdims=True)
    loss2 = jax.block_until_ready(
        jax.jit(lambda a: supcon_loss(a, block_rows=16))(x2))
    ref2 = supcon_loss_ref(x2, cast_bf16=True)
    assert bool(jnp.isfinite(loss2)), loss2
    assert abs(float(loss2) - float(ref2)) < 2e-3, (float(loss2), float(ref2))

    print("KERNEL_OK")
</pallas_src>

<mosaic_0001>
module attributes {stable_mosaic.version = 11 : i64} {
  func.func @_supcon_kernel(%arg0: i32, %arg1: memref<16x128xbf16, #tpu.memory_space<vmem>>, %arg2: memref<16x1xi32, #tpu.memory_space<vmem>>, %arg3: memref<1x16xi32, #tpu.memory_space<vmem>>, %arg4: memref<1x1x1xf32, #tpu.memory_space<vmem>>) attributes {dimension_semantics = [#tpu.dimension_semantics<parallel>], iteration_bounds = array<i64: 1>, scalar_prefetch = 0 : i64, scratch_operands = 0 : i64, tpu.core_type = #tpu.core_type<tc>, window_params = [{pipeline_mode = #tpu.pipeline_mode<synchronous>, transform_indices = @transform_0, window_bounds = array<i64: 16, 128>}, {transform_indices = @transform_1, window_bounds = array<i64: 16, 1>}, {pipeline_mode = #tpu.pipeline_mode<synchronous>, transform_indices = @transform_2, window_bounds = array<i64: 1, 16>}, {transform_indices = @transform_3, window_bounds = array<i64: 1, 1, 1>}]} {
    %c16_i32 = arith.constant 16 : i32
    %0 = arith.muli %arg0, %c16_i32 : i32
    %1 = tpu.assume_multiple %0, 16 : i32
    %2 = arith.index_cast %1 : i32 to index
    %c0 = arith.constant 0 : index
    %3 = vector.load %arg1[%2, %c0] : memref<16x128xbf16, #tpu.memory_space<vmem>>, vector<16x128xbf16>
    %cst = arith.constant 2.000000e+00 : bf16
    %4 = vector.broadcast %cst : bf16 to vector<16x128xbf16>
    %5 = arith.mulf %3, %4 : vector<16x128xbf16>
    %c0_0 = arith.constant 0 : index
    %c0_1 = arith.constant 0 : index
    %6 = vector.load %arg1[%c0_0, %c0_1] : memref<16x128xbf16, #tpu.memory_space<vmem>>, vector<16x128xbf16>
    %cst_2 = arith.constant dense<0.000000e+00> : vector<16x16xf32>
    %7 = tpu.matmul %5, %6, %cst_2 {dimension_numbers = #tpu.dot_dimension_numbers<[1], [1], [0], [0], [0, 0, 1, 0], [], []>} : vector<16x128xbf16>, vector<16x128xbf16>, vector<16x16xf32> -> vector<16x16xf32>
    %8 = tpu.iota {dimensions = array<i32: 0>} : vector<16x1xi32>
    %9 = vector.broadcast %1 : i32 to vector<16x1xi32>
    %10 = arith.addi %9, %8 : vector<16x1xi32>
    %11 = tpu.iota {dimensions = array<i32: 1>} : vector<1x16xi32>
    %12 = vector.broadcast %10 : vector<16x1xi32> to vector<16x16xi32>
    %13 = vector.broadcast %11 : vector<1x16xi32> to vector<16x16xi32>
    %14 = arith.cmpi ne, %12, %13 : vector<16x16xi32>
    %c0_3 = arith.constant 0 : index
    %c0_4 = arith.constant 0 : index
    %15 = vector.load %arg2[%c0_3, %c0_4] : memref<16x1xi32, #tpu.memory_space<vmem>>, vector<16x1xi32>
    %c0_5 = arith.constant 0 : index
    %c0_6 = arith.constant 0 : index
    %16 = vector.load %arg3[%c0_5, %c0_6] : memref<1x16xi32, #tpu.memory_space<vmem>>, vector<1x16xi32>
    %17 = vector.broadcast %15 : vector<16x1xi32> to vector<16x16xi32>
    %18 = vector.broadcast %16 : vector<1x16xi32> to vector<16x16xi32>
    %19 = arith.cmpi eq, %17, %18 : vector<16x16xi32>
    %20 = arith.andi %19, %14 : vector<16x16xi1>
    %cst_7 = arith.constant dense<0xFF800000> : vector<16xf32>
    %21 = vector.multi_reduction <maximumf>, %7, %cst_7 [1] : vector<16x16xf32> to vector<16xf32>
    %22 = vector.shape_cast %21 : vector<16xf32> to vector<16x1xf32>
    %23 = vector.broadcast %22 : vector<16x1xf32> to vector<16x16xf32>
    %24 = arith.subf %7, %23 : vector<16x16xf32>
    %25 = math.exp %24 : vector<16x16xf32>
    %cst_8 = arith.constant 0.000000e+00 : f32
    %26 = vector.broadcast %cst_8 : f32 to vector<16x16xf32>
    %27 = arith.select %14, %25, %26 : vector<16x16xi1>, vector<16x16xf32>
    %cst_9 = arith.constant dense<0.000000e+00> : vector<16xf32>
    %28 = vector.multi_reduction <add>, %27, %cst_9 [1] : vector<16x16xf32> to vector<16xf32>
    %29 = vector.shape_cast %28 : vector<16xf32> to vector<16x1xf32>
    %30 = math.log %29 : vector<16x1xf32>
    %cst_10 = arith.constant 0.000000e+00 : f32
    %31 = vector.broadcast %cst_10 : f32 to vector<16x16xf32>
    %32 = arith.select %20, %24, %31 : vector<16x16xi1>, vector<16x16xf32>
    %cst_11 = arith.constant dense<0.000000e+00> : vector<16xf32>
    %33 = vector.multi_reduction <add>, %32, %cst_11 [1] : vector<16x16xf32> to vector<16xf32>
    %34 = vector.shape_cast %33 : vector<16xf32> to vector<16x1xf32>
    %cst_12 = arith.constant 1.000000e+00 : f32
    %35 = vector.broadcast %cst_12 : f32 to vector<16x1xf32>
    %36 = arith.mulf %34, %35 : vector<16x1xf32>
    %37 = arith.subf %36, %30 : vector<16x1xf32>
    %cst_13 = arith.constant dense<0.000000e+00> : vector<1xf32>
    %38 = vector.multi_reduction <add>, %37, %cst_13 [0] : vector<16x1xf32> to vector<1xf32>
    %39 = vector.shape_cast %38 : vector<1xf32> to vector<1x1xf32>
    %cst_14 = arith.constant 0.000000e+00 : f32
    %40 = vector.broadcast %cst_14 : f32 to vector<1x1xf32>
    %41 = arith.subf %40, %39 : vector<1x1xf32>
    %c0_15 = arith.constant 0 : index
    %c0_16 = arith.constant 0 : index
    %c0_17 = arith.constant 0 : index
    %42 = vector.load %arg4[%c0_15, %c0_16, %c0_17] : memref<1x1x1xf32, #tpu.memory_space<vmem>>, vector<1x1x1xf32>
    %43 = vector.shape_cast %42 : vector<1x1x1xf32> to vector<1x1xf32>
    %44 = vector.shape_cast %41 : vector<1x1xf32> to vector<1x1x1xf32>
    tpu.vector_store %arg4[%c0_15, %c0_16, %c0_17], %44 {strides = array<i32>} : memref<1x1x1xf32, #tpu.memory_space<vmem>>, vector<1x1x1xf32>,
    return
  }
  func.func @transform_0(%arg0: i32) -> (i32, i32) {
    %c0_i32 = arith.constant 0 : i32
    %c0_i32_0 = arith.constant 0 : i32
    %c0_i32_1 = arith.constant 0 : i32
    return %c0_i32, %c0_i32_0 : i32, i32
  }
  func.func @transform_1(%arg0: i32) -> (i32, i32) {
    %c0_i32 = arith.constant 0 : i32
    %c0_i32_0 = arith.constant 0 : i32
    return %arg0, %c0_i32 : i32, i32
  }
  func.func @transform_2(%arg0: i32) -> (i32, i32) {
    %c0_i32 = arith.constant 0 : i32
    %c0_i32_0 = arith.constant 0 : i32
    %c0_i32_1 = arith.constant 0 : i32
    return %c0_i32, %c0_i32_0 : i32, i32
  }
  func.func @transform_3(%arg0: i32) -> (i32, i32, i32) {
    %c0_i32 = arith.constant 0 : i32
    %c0_i32_0 = arith.constant 0 : i32
    %c0_i32_1 = arith.constant 0 : i32
    return %arg0, %c0_i32, %c0_i32_0 : i32, i32, i32
  }
}

</mosaic_0001>

<llo_original>
// kernel: tile.11
$region0: #{tile.11}
  %s0 = inlined_call_operand.vmem [shape: s32[2,8], index: 0, kind: input, shape index: {}]
  %s1 = inlined_call_operand.vmem [shape: s32[1,16], index: 1, kind: output, shape index: {}]
  $region1: #{tile.11} parent=0
    #allocation0 [shape = 'u8[4096]{0}', space=vmem, size = 0x1000, scoped, tag = 'scoped mem for output reshape']
    #allocation1 [shape = 'u8[4096]{0}', space=vmem, size = 0x1000, scoped, tag = 'scoped mem for input reshape']
    %s3 = sshllo.u32 0, 2
    %v4 = vld [vmem:[%s0] sm:%s3]
    %5 = vst [vmem:[#allocation1] sm:%s3] %v4
    %v6 = vld [vmem:[#allocation1] sm:$0x1]
    %vm7 = vcmask 64512
    %8 = vst.msk [vmem:[#allocation0] sm:$0x1] %vm7, %v6
    %s9 = scalar_lea.vmem [#allocation1], 1
    %v10 = vld [vmem:[%s9] sm:$0x1]
    %11 = vrot.lane.b32.xlu0 %v10, 8
    %v12 = vpop.permute.xlu0 %11
    %vm13 = vcmask 130112
    %14 = vst.msk [vmem:[#allocation0] sm:$0x1] %vm13, %v12
    %s16 = sshllo.u32 0, 1
    %v18 = vld [vmem:[#allocation0] sm:%s16]
    %s19 = sshllo.u32 0, 1
    %20 = vst [vmem:[%s1] sm:%s19] %v18

// kernel: tile.0
$region0: #{tile.0}
  %s0 = inlined_call_operand.vmem [shape: s32[2,8], index: 0, kind: input, shape index: {}]
  %s1 = inlined_call_operand.vmem [shape: s32[16,1], index: 1, kind: output, shape index: {}]
  $region1: #{tile.0} parent=0
    #allocation0 [shape = 'u8[4096]{0}', space=vmem, size = 0x1000, scoped, tag = 'scoped mem for input reshape']
    %s3 = sshllo.u32 0, 2
    %v4 = vld [vmem:[%s0] sm:%s3]
    %5 = vst [vmem:[#allocation0] sm:%s3] %v4
    %v6 = vld [vmem:[#allocation0] sm:$0x3]
    %vm7 = vcmask 7168
    %8 = vst.msk [vmem:[%s1] ss:$8 sm:$0x3] %vm7, %v6
    %v9 = vld [vmem:[#allocation0] sm:$0x3]
    %10 = vrot.lane.b32.xlu0 %v9, 127
    %v11 = vpop.permute.xlu0 %10
    %vm12 = vcmask 7168
    %s13 = scalar_lea.vmem %s1, 1
    %14 = vst.msk [vmem:[%s13] ss:$8 sm:$0x3] %vm12, %v11
    %v15 = vld [vmem:[#allocation0] sm:$0x3]
    %16 = vrot.lane.b32.xlu0 %v15, 126
    %v17 = vpop.permute.xlu0 %16
    %vm18 = vcmask 7168
    %s19 = scalar_lea.vmem %s1, 2
    %20 = vst.msk [vmem:[%s19] ss:$8 sm:$0x3] %vm18, %v17
    %v21 = vld [vmem:[#allocation0] sm:$0x3]
    %22 = vrot.lane.b32.xlu0 %v21, 125
    %v23 = vpop.permute.xlu0 %22
    %vm24 = vcmask 7168
    %s25 = scalar_lea.vmem %s1, 3
    %26 = vst.msk [vmem:[%s25] ss:$8 sm:$0x3] %vm24, %v23
    %v27 = vld [vmem:[#allocation0] sm:$0x3]
    %28 = vrot.lane.b32.xlu0 %v27, 124
    %v29 = vpop.permute.xlu0 %28
    %vm30 = vcmask 7168
    %s31 = scalar_lea.vmem %s1, 4
    %32 = vst.msk [vmem:[%s31] ss:$8 sm:$0x3] %vm30, %v29
    %v33 = vld [vmem:[#allocation0] sm:$0x3]
    %34 = vrot.lane.b32.xlu0 %v33, 123
    %v35 = vpop.permute.xlu0 %34
    %vm36 = vcmask 7168
    %s37 = scalar_lea.vmem %s1, 5
    %38 = vst.msk [vmem:[%s37] ss:$8 sm:$0x3] %vm36, %v35
    %v39 = vld [vmem:[#allocation0] sm:$0x3]
    %40 = vrot.lane.b32.xlu0 %v39, 122
    %v41 = vpop.permute.xlu0 %40
    %vm42 = vcmask 7168
    %s43 = scalar_lea.vmem %s1, 6
    %44 = vst.msk [vmem:[%s43] ss:$8 sm:$0x3] %vm42, %v41
    %v45 = vld [vmem:[#allocation0] sm:$0x3]
    %46 = vrot.lane.b32.xlu0 %v45, 121
    %v47 = vpop.permute.xlu0 %46
    %vm48 = vcmask 7168
    %s49 = scalar_lea.vmem %s1, 7
    %50 = vst.msk [vmem:[%s49] ss:$8 sm:$0x3] %vm48, %v47

// kernel: supcon_loss.1
$region0: #{supcon_loss.1}
  #allocation0 [shape = 'u32[]', space=smem, size = 0x4, offset = 0x4, fixed_abs, tag = 'smem constant byte address 0x4 - core index']
  #allocation1 [shape = 'u32[144,128]{1,0:T(1,128)}', space=vmem, size = 0x12000, scoped, tag = 'internal scratch']
  %s0 = inlined_call_operand.vmem [shape: bf16[16,128], index: 0, kind: input, shape index: {}]
  %s1 = inlined_call_operand.vmem [shape: s32[16,1], index: 1, kind: input, shape index: {}]
  %s2 = inlined_call_operand.vmem [shape: s32[1,16], index: 2, kind: input, shape index: {}]
  %s3 = inlined_call_operand.hbm [shape: f32[1,1,1], index: 3, kind: output, shape index: {}]
  %s4 = sld [smem:[#allocation0]]
  $region22: #{supcon_loss.1} parent=0
    _
  %s6 = ssub.s32 1, %s4
  %s7 = scalar_select 0, %s6, %s4
  $region1: #{supcon_loss.1} parent=0
    #allocation2 [shape = 'u8[512]{0}', space=vmem, size = 0x400, scoped, tag = 'output window, operand 0, single buffered']
    #allocation3 [shape = 's32[1]{0}', space=sflag, size = 0x4, scoped, tag = 'scoped memory for supcon_loss.1']
    %8 = vsyncpa [#allocation3], 0
    // Predicated region
    $region2: #{supcon_loss.1} parent=1 // pred_check
      _
    $region3: #{supcon_loss.1} parent=1 // pred_check_branch
      %10 = sbr.rel (0) target = $region5
    $region4: #{supcon_loss.1} parent=1 // pred_region
      _
    $region5: #{supcon_loss.1} parent=1 // pred_fallthru
      _
    // Predicated region
    $region6: #{supcon_loss.1} parent=1 // pred_check
      _
    $region7: #{supcon_loss.1} parent=1 // pred_check_branch
      %12 = sbr.rel (0) target = $region9
    $region8: #{supcon_loss.1} parent=1 // pred_region
      _
    $region9: #{supcon_loss.1} parent=1 // pred_fallthru
      _
    // Predicated region
    $region10: #{supcon_loss.1} parent=1 // pred_check
      _
    $region11: #{supcon_loss.1} parent=1 // pred_check_branch
      %14 = sbr.rel (0) target = $region13
    $region12: #{supcon_loss.1} parent=1 // pred_region
      _
    $region13: #{supcon_loss.1} parent=1 // pred_fallthru
      _
    %s17 = smul.u32 0, 16
    %s18 = sshra.s32 %s17, 3
    %s19 = sand.u32 %s17, 7
    %s20 = smul.addr %s18, 4
    %s21 = scalar_lea.vmem %s0, %s20
    %v22 = vld [vmem:[%s21] sm:$0xf]
    %v23 = vld [vmem:[%s21 + $0x4] sm:$0xf]
    %v24 = vmul.bf16 %v22, 1073758208
    %v25 = vmul.bf16 %v23, 1073758208
    %v26 = vld [vmem:[%s0] sm:$0xf]
    %v27 = vld [vmem:[%s0 + $0x4] sm:$0xf]
    %v30 = vunpack.c.l.b16 %v24
    %v31 = vunpack.c.l.b16 %v25
    %v32 = vpack.c.b16 %v31, %v30
    %v36 = vunpack.c.l.b16 %v26
    %v37 = vunpack.c.l.b16 %v27
    %v38 = vpack.c.b16 %v37, %v36
    %40 = vmatprep.subr.bf16.mxu0 0
    %41 = vmatpush1.bf16.xpose.msra.mxu0 %v38
    %42 = vmatprep.subr.bf16.mxu0 0
    %43 = vmatpush1.bf16.xpose.msra.mxu0 0
    %44 = vmatprep.subr.bf16.mxu0 0
    %45 = vmatpush1.bf16.xpose.msra.mxu0 0
    %46 = vmatprep.subr.bf16.mxu0 0
    %47 = vmatpush1.bf16.xpose.msra.mxu0 0
    %48 = vmatprep.subr.bf16.mxu0 0
    %49 = vmatpush1.bf16.xpose.msra.mxu0 0
    %50 = vmatprep.subr.bf16.mxu0 0
    %51 = vmatpush1.bf16.xpose.msra.mxu0 0
    %52 = vmatprep.subr.bf16.mxu0 0
    %53 = vmatpush1.bf16.xpose.msra.mxu0 0
    %54 = vmatprep.subr.bf16.mxu0 0
    %55 = vmatpush1.bf16.xpose.msra.mxu0 0
    %56 = vmatprep.subr.bf16.mxu0 0
    %57 = vmatpush1.bf16.xpose.msra.mxu0 0
    %58 = vmatprep.subr.bf16.mxu0 0
    %59 = vmatpush1.bf16.xpose.msra.mxu0 0
    %60 = vmatprep.subr.bf16.mxu0 0
    %61 = vmatpush1.bf16.xpose.msra.mxu0 0
    %62 = vmatprep.subr.bf16.mxu0 0
    %63 = vmatpush1.bf16.xpose.msra.mxu0 0
    %64 = vmatprep.subr.bf16.mxu0 0
    %65 = vmatpush1.bf16.xpose.msra.mxu0 0
    %66 = vmatprep.subr.bf16.mxu0 0
    %67 = vmatpush1.bf16.xpose.msra.mxu0 0
    %68 = vmatprep.subr.bf16.mxu0 0
    %69 = vmatpush1.bf16.xpose.msra.mxu0 0
    %70 = vmatprep.subr.bf16.mxu0 0
    %71 = vmatpush1.bf16.xpose.msra.mxu0 0
    %72 = vmatprep.mubr.bf16.mxu0 0
    %73 = vmatmul.mubr.bf16.gmra.mrb[0].mxu0 %v32
    %v74 = vpop.f32.mrb[0].mxu0
    %v75 = vadd.f32 0.0, %v74
    %v76 = vpop.f32.mrb[0].mxu0
    %v77 = vpop.f32.mrb[0].mxu0
    %v78 = vadd.f32 0.0, %v77
    %v79 = vpop.f32.mrb[0].mxu0
    %80 = vdwg.mxu0
    %v81 = vlaneseq
    %v82 = vshrl.u32 %v81, 7
    %v83 = vadd.s32 %v82, 8
    %v84 = vstv %s17
    %v85 = vadd.s32 %v84, %v82
    %v86 = vadd.s32 %v84, %v83
    %v87 = vlaneseq
    %v88 = vand.u32 %v87, 127
    %vm89 = vcmp.ne.s32.totalorder %v85, %v88
    %vm90 = vcmp.ne.s32.totalorder %v86, %v88
    %v91 = vld [vmem:[%s1] sm:$0xff]
    %v92 = vld [vmem:[%s1 + $0x8] sm:$0xff]
    %v93 = vld [vmem:[%s2] sm:$0x1]
    %94 = vset.pattern.permute.xlu0 0
    %95 = vperm.xlu0 %94, %v91
    %v96 = vpop.permute.xlu0 %95
    %97 = vset.pattern.permute.xlu0 0
    %98 = vperm.xlu0 %97, %v92
    %v99 = vpop.permute.xlu0 %98
    %v100 = vlaneseq
    %v101 = vshrl.u32 %v100, 7
    %v102 = vsub.s32 0, %v101
    %v103 = vrot.slane %v93, %v102
    %vm104 = vcmp.eq.s32.totalorder %v96, %v103
    %vm105 = vcmp.eq.s32.totalorder %v99, %v103
    %vm106 = vmand %vm104, %vm89
    %vm107 = vmand %vm105, %vm90
    %vm108 = vcmask 130048
    %v109 = vsel %vm108, %v75, -inf
    %110 = vmax.xlane.f32.xlu0 %v109
    %v111 = vpop.xlane.xlu0 %110
    %v112 = vsel %vm108, %v78, -inf
    %113 = vmax.xlane.f32.xlu0 %v112
    %v114 = vpop.xlane.xlu0 %113
    %v115 = vsub.f32 %v75, %v111
    %v116 = vsub.f32 %v78, %v114
    %v117 = vmul.f32 %v115, 1.442695
    %v118 = vpow.pop %v117
    %v119 = vmul.f32 %v116, 1.442695
    %v120 = vpow.pop %v119
    %v121 = vsel %vm89, %v118, 0.0
    %v122 = vsel %vm90, %v120, 0.0
    %v123 = vsel %vm108, %v121, 0.0
    %124 = vadd.xlane.f32.xlu0 %v123
    %v125 = vpop.xlane.xlu0 %124
    %v126 = vsel %vm108, %v122, 0.0
    %127 = vadd.xlane.f32.xlu0 %v126
    %v128 = vpop.xlane.xlu0 %127
    %v129 = vlog2.pop %v125
    %v130 = vmul.f32 %v129, 0.6931472
    %v131 = vlog2.pop %v128
    %v132 = vmul.f32 %v131, 0.6931472
    %v133 = vsel %vm106, %v115, 0.0
    %v134 = vsel %vm107, %v116, 0.0
    %v135 = vsel %vm108, %v133, 0.0
    %136 = vadd.xlane.f32.xlu0 %v135
    %v137 = vpop.xlane.xlu0 %136
    %v138 = vsel %vm108, %v134, 0.0
    %139 = vadd.xlane.f32.xlu0 %v138
    %v140 = vpop.xlane.xlu0 %139
    %v141 = vsub.f32 %v137, %v130
    %v142 = vsub.f32 %v140, %v132
    %v143 = vadd.f32 %v141, %v142
    %v144 = vrot.slane %v143, 4
    %v145 = vadd.f32 %v143, %v144
    %v146 = vrot.slane %v145, 2
    %v147 = vadd.f32 %v145, %v146
    %v148 = vrot.slane %v147, 1
    %v149 = vadd.f32 %v147, %v148
    %v150 = vsub.f32 0.0, %v149
    %vm151 = vcmask 0
    %152 = vst.msk [vmem:[#allocation2] sm:$0x1] %vm151, %v150
    // Predicated region
    $region14: #{supcon_loss.1} parent=1 // pred_check
      _
    $region15: #{supcon_loss.1} parent=1 // pred_check_branch
      %154 = sbr.rel (0) target = $region17
    $region16: #{supcon_loss.1} parent=1 // pred_region
      %s156 = ssub.s32 16, 16
      %157 = vsyncadd [#allocation3], %s156
      %s159 = sshll.u32 [#allocation2], 4
      %s160 = int_to_ptr.vmem [resolvable:$true] %s159
      %162 = dma.vmem_to_hbm [thread:$0]  %s160, 16, %s3, [#allocation3]
    $region17: #{supcon_loss.1} parent=1 // pred_fallthru
      _
    // Predicated region
    $region18: #{supcon_loss.1} parent=1 // pred_check
      _
    $region19: #{supcon_loss.1} parent=1 // pred_check_branch
      %164 = sbr.rel (0) target = $region21
    $region20: #{supcon_loss.1} parent=1 // pred_region
      %165 = dma.done [#allocation3], 16
    $region21: #{supcon_loss.1} parent=1 // pred_fallthru
      _
    %166 = vsyncpa [#allocation3], 1

</llo_original>
